<compile_context>
chip_gen: v7x
topology: tpu7x:2x2x1
jax: 0.10.0
libtpu: 0.0.40
codegen_flags: <defaults>
</compile_context>

<pallas_src>
import functools

import jax
import jax.numpy as jnp
from jax import lax
from jax.experimental import pallas as pl
from jax.experimental.pallas import tpu as pltpu


def emg_cnn_kernel(x_ref, small_ref, big_ref, out_ref, xpad_sc, p1pad_sc,
                   *, B, L, C1, C2, NC):
    f32 = jnp.float32
    L2, L4 = L // 2, L // 4
    mm_dtype = big_ref.dtype
    LANES = big_ref.shape[1]

    # ---- conv1 (Cin=1, k=3, pad=1): 3 VPU FMAs on shifted slices -------------
    # Only the two boundary rows of the pad scratch are zeroed.
    xpad_sc[:, 0:1, :] = jnp.zeros((B, 1, 1), f32)
    xpad_sc[:, L + 1:L + 2, :] = jnp.zeros((B, 1, 1), f32)
    xpad_sc[:, 1:L + 1, :] = x_ref[...]
    acc1 = xpad_sc[:, 0:L, :] * small_ref[0:1, 0:C1].reshape(1, 1, C1)
    for k in (1, 2):                                       # static unroll
        acc1 = acc1 + xpad_sc[:, k:k + L, :] * small_ref[k:k + 1, 0:C1].reshape(1, 1, C1)

    # maxpool(2) over L, THEN bias + ReLU (monotone; bias constant per channel)
    p1 = jnp.max(acc1.reshape(B, L2, 2, C1), axis=2)       # (B, L2, C1) f32
    p1 = jnp.maximum(p1 + small_ref[3:4, 0:C1].reshape(1, 1, C1), 0.0)

    # ---- conv2 (k=3, pad=1): 3 accumulated MXU matmuls on tap slices ----------
    # pad scratch kept f32 (cast to mm_dtype only at the dot); boundary rows only.
    p1pad_sc[:, 0:1, :] = jnp.zeros((B, 1, C1), f32)
    p1pad_sc[:, L2 + 1:L2 + 2, :] = jnp.zeros((B, 1, C1), f32)
    p1pad_sc[:, 1:L2 + 1, :] = p1
    acc2 = jnp.zeros((B * L2, C2), f32)
    for k in range(3):                                     # static unroll
        tap = p1pad_sc[:, k:k + L2, :].reshape(B * L2, C1).astype(mm_dtype)
        acc2 = acc2 + jnp.dot(tap, big_ref[k * C1:(k + 1) * C1, :],
                              preferred_element_type=f32)

    # maxpool(2) over L, THEN bias + ReLU
    p2 = jnp.max(acc2.reshape(B, L4, 2, C2), axis=2)       # (B, L4, C2) f32
    p2 = jnp.maximum(p2 + small_ref[4:5, 0:C2].reshape(1, 1, C2), 0.0)

    # ---- flatten (idx = l*C2 + c; fc1 weight columns pre-permuted to match) ---
    flat = p2.reshape(B, L4 * C2).astype(mm_dtype)

    # ---- fc1 + ReLU, fc2 (128-lane padded; extra lanes are exact zeros) -------
    r0 = 3 * C1
    r1 = r0 + L4 * C2
    r2 = r1 + LANES
    h = jnp.dot(flat, big_ref[r0:r1, :], preferred_element_type=f32) + small_ref[5:6, :]
    h = jnp.maximum(h, 0.0).astype(mm_dtype)               # (B, 128)
    outp = jnp.dot(h, big_ref[r1:r2, :], preferred_element_type=f32) + small_ref[6:7, :]
    out_ref[...] = outp[:, 0:NC].astype(out_ref.dtype)


def prepare_params(params, mm_dtype=jnp.float32):
    """One-time packing of PyTorch-shaped weights into 2 VMEM slabs.

    Returns:
      small: (8, 128) f32   -- conv1 weight taps + every bias, lane-padded.
      big:   (3*C1 + L4*C2 + 128, 128) mm_dtype -- conv2/fc1/fc2 weights,
             rows stacked, lanes zero-padded to 128.
    mm_dtype: MXU operand dtype. Keep f32 on v5e; bf16 on v6e/v7x halves the
    weight-slab DMA with f32 accumulation.
    """
    LANES = 128
    C1 = params["conv1_w"].shape[0]              # 64
    C2 = params["conv2_w"].shape[0]              # 128
    fc1_out, fc1_in = params["fc1_w"].shape      # (64, C2*L4)
    NC = params["fc2_w"].shape[0]
    L4 = fc1_in // C2
    assert C2 == LANES and fc1_out <= LANES and NC <= LANES and C1 <= LANES

    def pad_lanes(a):
        return jnp.pad(a, ((0, 0), (0, LANES - a.shape[1])))

    # --- big slab (matmul operands) ---
    # conv2: tap-major rows, w2[k*C1 + i, o] = conv2_w[o, i, k]
    w2 = jnp.transpose(params["conv2_w"], (2, 1, 0)).reshape(3 * C1, C2)
    # fc1: PyTorch flatten index is c*L4 + l, kernel flatten is l*C2 + c
    wfc1 = (params["fc1_w"].reshape(fc1_out, C2, L4)
            .transpose(2, 1, 0)
            .reshape(L4 * C2, fc1_out))
    wfc2 = jnp.transpose(params["fc2_w"], (1, 0))          # (64, NC)
    big = jnp.concatenate([
        pad_lanes(w2),                                                  # 3*C1 rows
        pad_lanes(wfc1),                                                # L4*C2 rows
        jnp.pad(pad_lanes(wfc2), ((0, LANES - fc1_out), (0, 0))),       # 128 rows
    ], axis=0).astype(mm_dtype)

    # --- small slab (f32 VPU path) ---
    w1 = jnp.transpose(params["conv1_w"][:, 0, :], (1, 0))  # (3, C1), w1[k,c]=W[c,0,k]
    small = jnp.concatenate([
        pad_lanes(w1),                                       # rows 0..2: conv1 W
        pad_lanes(params["conv1_b"].reshape(1, C1)),         # row 3: conv1 b
        pad_lanes(params["conv2_b"].reshape(1, C2)),         # row 4: conv2 b
        pad_lanes(params["fc1_b"].reshape(1, fc1_out)),      # row 5: fc1 b (padded)
        pad_lanes(params["fc2_b"].reshape(1, NC)),           # row 6: fc2 b (padded)
        jnp.zeros((1, LANES), jnp.float32),                  # row 7: sublane pad
    ], axis=0).astype(jnp.float32)

    return {"small": small, "big": big}


def emg_cnn_forward(x, small, big, *, num_classes):
    """x: (B, 1, L) float32 in PyTorch NCW layout; small/big from prepare_params."""
    B, cin, L = x.shape
    assert cin == 1 and L % 4 == 0
    L2, L4 = L // 2, L // 4
    C2 = big.shape[1]
    assert (big.shape[0] - C2 - L4 * C2) % 3 == 0
    C1 = (big.shape[0] - C2 - L4 * C2) // 3
    NC = num_classes

    x_k = x.reshape(B, L, 1)            # metadata-only: (B,1,L) -> (B,L,1)

    kernel = functools.partial(emg_cnn_kernel, B=B, L=L, C1=C1, C2=C2, NC=NC)
    vmem = pl.BlockSpec(memory_space=pltpu.MemorySpace.VMEM)
    return pl.pallas_call(
        kernel,
        out_shape=jax.ShapeDtypeStruct((B, NC), jnp.float32),
        in_specs=[vmem, vmem, vmem],
        out_specs=vmem,
        scratch_shapes=[
            pltpu.VMEM((B, L + 2, 1), jnp.float32),     # zero-padded x (conv1 taps)
            pltpu.VMEM((B, L2 + 2, C1), jnp.float32),   # zero-padded pool1 output
        ],
    )(x_k, small, big)


def reference_forward(x, p):
    """Pure-JAX replica of the PyTorch forward (NCW layout) for validation."""
    y = lax.conv_general_dilated(x, p["conv1_w"], (1,), [(1, 1)],
                                 dimension_numbers=("NCH", "OIH", "NCH"))
    y = jax.nn.relu(y + p["conv1_b"][None, :, None])
    B, C, Lc = y.shape
    y = jnp.max(y.reshape(B, C, Lc // 2, 2), axis=-1)
    y = lax.conv_general_dilated(y, p["conv2_w"], (1,), [(1, 1)],
                                 dimension_numbers=("NCH", "OIH", "NCH"))
    y = jax.nn.relu(y + p["conv2_b"][None, :, None])
    B, C, Lc = y.shape
    y = jnp.max(y.reshape(B, C, Lc // 2, 2), axis=-1)
    flat = y.reshape(B, -1)
    h = jax.nn.relu(flat @ p["fc1_w"].T + p["fc1_b"])
    return h @ p["fc2_w"].T + p["fc2_b"]


if __name__ == "__main__":
    B, L, NC = 2, 16, 4          # input_shape=(16, 1), num_classes=4
    key = jax.random.PRNGKey(0)
    keys = jax.random.split(key, 9)

    def u(k, shape, fan_in):
        bound = 1.0 / (fan_in ** 0.5)
        return jax.random.uniform(k, shape, jnp.float32, -bound, bound)

    fc1_in = 128 * (L // 4)
    params = {
        "conv1_w": u(keys[0], (64, 1, 3), 1 * 3),
        "conv1_b": u(keys[1], (64,), 1 * 3),
        "conv2_w": u(keys[2], (128, 64, 3), 64 * 3),
        "conv2_b": u(keys[3], (128,), 64 * 3),
        "fc1_w":   u(keys[4], (64, fc1_in), fc1_in),
        "fc1_b":   u(keys[5], (64,), fc1_in),
        "fc2_w":   u(keys[6], (NC, 64), 64),
        "fc2_b":   u(keys[7], (NC,), 64),
    }
    x = jax.random.normal(keys[8], (B, 1, L), jnp.float32)

    ref = reference_forward(x, params)
    fwd = jax.jit(functools.partial(emg_cnn_forward, num_classes=NC))

    # f32 matmul path (exact check against the PyTorch-equivalent reference).
    pp_f32 = prepare_params(params, jnp.float32)
    out_f32 = fwd(x, pp_f32["small"], pp_f32["big"])
    jax.block_until_ready(out_f32)
    assert out_f32.shape == (B, NC)
    assert jnp.allclose(out_f32, ref, atol=1e-4, rtol=1e-4), (out_f32, ref)

    # bf16 matmul operands, f32 accumulation (MXU-native on v6e/v7x).
    pp_bf16 = prepare_params(params, jnp.bfloat16)
    out_bf16 = fwd(x, pp_bf16["small"], pp_bf16["big"])
    jax.block_until_ready(out_bf16)
    assert jnp.allclose(out_bf16, ref, atol=1e-1, rtol=1e-1), (out_bf16, ref)

    print("KERNEL_OK")
</pallas_src>

<mosaic_0001>
module attributes {stable_mosaic.version = 11 : i64} {
  func.func @emg_cnn_kernel(%arg0: memref<2x16x1xf32, #tpu.memory_space<vmem>>, %arg1: memref<8x128xf32, #tpu.memory_space<vmem>>, %arg2: memref<832x128xf32, #tpu.memory_space<vmem>>, %arg3: memref<2x4xf32, #tpu.memory_space<vmem>>, %arg4: memref<2x18x1xf32, #tpu.memory_space<vmem>>, %arg5: memref<2x10x64xf32, #tpu.memory_space<vmem>>) attributes {dimension_semantics = [], scalar_prefetch = 0 : i64, scratch_operands = 2 : i64, tpu.core_type = #tpu.core_type<tc>} {
    %cst = arith.constant 0.000000e+00 : f32
    %0 = vector.broadcast %cst : f32 to vector<2x1x1xf32>
    %c0 = arith.constant 0 : index
    %c0_0 = arith.constant 0 : index
    %c0_1 = arith.constant 0 : index
    %1 = vector.load %arg4[%c0, %c0_0, %c0_1] : memref<2x18x1xf32, #tpu.memory_space<vmem>>, vector<2x1x1xf32>
    tpu.vector_store %arg4[%c0, %c0_0, %c0_1], %0 {strides = array<i32>} : memref<2x18x1xf32, #tpu.memory_space<vmem>>, vector<2x1x1xf32>,
    %cst_2 = arith.constant 0.000000e+00 : f32
    %2 = vector.broadcast %cst_2 : f32 to vector<2x1x1xf32>
    %c0_3 = arith.constant 0 : index
    %c17 = arith.constant 17 : index
    %c0_4 = arith.constant 0 : index
    %3 = vector.load %arg4[%c0_3, %c17, %c0_4] : memref<2x18x1xf32, #tpu.memory_space<vmem>>, vector<2x1x1xf32>
    tpu.vector_store %arg4[%c0_3, %c17, %c0_4], %2 {strides = array<i32>} : memref<2x18x1xf32, #tpu.memory_space<vmem>>, vector<2x1x1xf32>,
    %c0_5 = arith.constant 0 : index
    %c0_6 = arith.constant 0 : index
    %c0_7 = arith.constant 0 : index
    %4 = vector.load %arg0[%c0_5, %c0_6, %c0_7] : memref<2x16x1xf32, #tpu.memory_space<vmem>>, vector<2x16x1xf32>
    %c0_8 = arith.constant 0 : index
    %c1 = arith.constant 1 : index
    %c0_9 = arith.constant 0 : index
    %5 = vector.load %arg4[%c0_8, %c1, %c0_9] : memref<2x18x1xf32, #tpu.memory_space<vmem>>, vector<2x16x1xf32>
    tpu.vector_store %arg4[%c0_8, %c1, %c0_9], %4 {strides = array<i32>} : memref<2x18x1xf32, #tpu.memory_space<vmem>>, vector<2x16x1xf32>,
    %c0_10 = arith.constant 0 : index
    %c0_11 = arith.constant 0 : index
    %c0_12 = arith.constant 0 : index
    %6 = vector.load %arg4[%c0_10, %c0_11, %c0_12] : memref<2x18x1xf32, #tpu.memory_space<vmem>>, vector<2x16x1xf32>
    %c0_13 = arith.constant 0 : index
    %c0_14 = arith.constant 0 : index
    %7 = vector.load %arg1[%c0_13, %c0_14] : memref<8x128xf32, #tpu.memory_space<vmem>>, vector<1x64xf32>
    %8 = vector.shape_cast %7 : vector<1x64xf32> to vector<1x1x64xf32>
    %9 = vector.broadcast %6 : vector<2x16x1xf32> to vector<2x16x64xf32>
    %10 = vector.broadcast %8 : vector<1x1x64xf32> to vector<2x16x64xf32>
    %11 = arith.mulf %9, %10 : vector<2x16x64xf32>
    %c0_15 = arith.constant 0 : index
    %c1_16 = arith.constant 1 : index
    %c0_17 = arith.constant 0 : index
    %12 = vector.load %arg4[%c0_15, %c1_16, %c0_17] : memref<2x18x1xf32, #tpu.memory_space<vmem>>, vector<2x16x1xf32>
    %c1_18 = arith.constant 1 : index
    %c0_19 = arith.constant 0 : index
    %13 = vector.load %arg1[%c1_18, %c0_19] : memref<8x128xf32, #tpu.memory_space<vmem>>, vector<1x64xf32>
    %14 = vector.shape_cast %13 : vector<1x64xf32> to vector<1x1x64xf32>
    %15 = vector.broadcast %12 : vector<2x16x1xf32> to vector<2x16x64xf32>
    %16 = vector.broadcast %14 : vector<1x1x64xf32> to vector<2x16x64xf32>
    %17 = arith.mulf %15, %16 : vector<2x16x64xf32>
    %18 = arith.addf %11, %17 : vector<2x16x64xf32>
    %c0_20 = arith.constant 0 : index
    %c2 = arith.constant 2 : index
    %c0_21 = arith.constant 0 : index
    %19 = vector.load %arg4[%c0_20, %c2, %c0_21] : memref<2x18x1xf32, #tpu.memory_space<vmem>>, vector<2x16x1xf32>
    %c2_22 = arith.constant 2 : index
    %c0_23 = arith.constant 0 : index
    %20 = vector.load %arg1[%c2_22, %c0_23] : memref<8x128xf32, #tpu.memory_space<vmem>>, vector<1x64xf32>
    %21 = vector.shape_cast %20 : vector<1x64xf32> to vector<1x1x64xf32>
    %22 = vector.broadcast %19 : vector<2x16x1xf32> to vector<2x16x64xf32>
    %23 = vector.broadcast %21 : vector<1x1x64xf32> to vector<2x16x64xf32>
    %24 = arith.mulf %22, %23 : vector<2x16x64xf32>
    %25 = arith.addf %18, %24 : vector<2x16x64xf32>
    %26 = vector.shape_cast %25 : vector<2x16x64xf32> to vector<2x8x2x64xf32>
    %cst_24 = arith.constant dense<0xFF800000> : vector<2x8x64xf32>
    %27 = vector.multi_reduction <maximumf>, %26, %cst_24 [2] : vector<2x8x2x64xf32> to vector<2x8x64xf32>
    %c3 = arith.constant 3 : index
    %c0_25 = arith.constant 0 : index
    %28 = vector.load %arg1[%c3, %c0_25] : memref<8x128xf32, #tpu.memory_space<vmem>>, vector<1x64xf32>
    %29 = vector.shape_cast %28 : vector<1x64xf32> to vector<1x1x64xf32>
    %30 = vector.broadcast %29 : vector<1x1x64xf32> to vector<2x8x64xf32>
    %31 = arith.addf %27, %30 : vector<2x8x64xf32>
    %cst_26 = arith.constant 0.000000e+00 : f32
    %32 = vector.broadcast %cst_26 : f32 to vector<2x8x64xf32>
    %33 = arith.maximumf %31, %32 : vector<2x8x64xf32>
    %cst_27 = arith.constant 0.000000e+00 : f32
    %34 = vector.broadcast %cst_27 : f32 to vector<2x1x64xf32>
    %c0_28 = arith.constant 0 : index
    %c0_29 = arith.constant 0 : index
    %c0_30 = arith.constant 0 : index
    %35 = vector.load %arg5[%c0_28, %c0_29, %c0_30] : memref<2x10x64xf32, #tpu.memory_space<vmem>>, vector<2x1x64xf32>
    tpu.vector_store %arg5[%c0_28, %c0_29, %c0_30], %34 {strides = array<i32>} : memref<2x10x64xf32, #tpu.memory_space<vmem>>, vector<2x1x64xf32>,
    %cst_31 = arith.constant 0.000000e+00 : f32
    %36 = vector.broadcast %cst_31 : f32 to vector<2x1x64xf32>
    %c0_32 = arith.constant 0 : index
    %c9 = arith.constant 9 : index
    %c0_33 = arith.constant 0 : index
    %37 = vector.load %arg5[%c0_32, %c9, %c0_33] : memref<2x10x64xf32, #tpu.memory_space<vmem>>, vector<2x1x64xf32>
    tpu.vector_store %arg5[%c0_32, %c9, %c0_33], %36 {strides = array<i32>} : memref<2x10x64xf32, #tpu.memory_space<vmem>>, vector<2x1x64xf32>,
    %c0_34 = arith.constant 0 : index
    %c1_35 = arith.constant 1 : index
    %c0_36 = arith.constant 0 : index
    %38 = vector.load %arg5[%c0_34, %c1_35, %c0_36] : memref<2x10x64xf32, #tpu.memory_space<vmem>>, vector<2x8x64xf32>
    tpu.vector_store %arg5[%c0_34, %c1_35, %c0_36], %33 {strides = array<i32>} : memref<2x10x64xf32, #tpu.memory_space<vmem>>, vector<2x8x64xf32>,
    %cst_37 = arith.constant 0.000000e+00 : f32
    %39 = vector.broadcast %cst_37 : f32 to vector<16x128xf32>
    %c0_38 = arith.constant 0 : index
    %c0_39 = arith.constant 0 : index
    %c0_40 = arith.constant 0 : index
    %40 = vector.load %arg5[%c0_38, %c0_39, %c0_40] : memref<2x10x64xf32, #tpu.memory_space<vmem>>, vector<2x8x64xf32>
    %41 = vector.shape_cast %40 : vector<2x8x64xf32> to vector<16x64xf32>
    %c0_41 = arith.constant 0 : index
    %c0_42 = arith.constant 0 : index
    %42 = vector.load %arg2[%c0_41, %c0_42] : memref<832x128xf32, #tpu.memory_space<vmem>>, vector<64x128xf32>
    %cst_43 = arith.constant dense<0.000000e+00> : vector<16x128xf32>
    %43 = tpu.matmul %41, %42, %cst_43 {dimension_numbers = #tpu.dot_dimension_numbers<[1], [0], [0], [1], [0, 0, 1, 1], [], []>} : vector<16x64xf32>, vector<64x128xf32>, vector<16x128xf32> -> vector<16x128xf32>
    %44 = arith.addf %39, %43 : vector<16x128xf32>
    %c0_44 = arith.constant 0 : index
    %c1_45 = arith.constant 1 : index
    %c0_46 = arith.constant 0 : index
    %45 = vector.load %arg5[%c0_44, %c1_45, %c0_46] : memref<2x10x64xf32, #tpu.memory_space<vmem>>, vector<2x8x64xf32>
    %46 = vector.shape_cast %45 : vector<2x8x64xf32> to vector<16x64xf32>
    %c64 = arith.constant 64 : index
    %c0_47 = arith.constant 0 : index
    %47 = vector.load %arg2[%c64, %c0_47] : memref<832x128xf32, #tpu.memory_space<vmem>>, vector<64x128xf32>
    %cst_48 = arith.constant dense<0.000000e+00> : vector<16x128xf32>
    %48 = tpu.matmul %46, %47, %cst_48 {dimension_numbers = #tpu.dot_dimension_numbers<[1], [0], [0], [1], [0, 0, 1, 1], [], []>} : vector<16x64xf32>, vector<64x128xf32>, vector<16x128xf32> -> vector<16x128xf32>
    %49 = arith.addf %44, %48 : vector<16x128xf32>
    %c0_49 = arith.constant 0 : index
    %c2_50 = arith.constant 2 : index
    %c0_51 = arith.constant 0 : index
    %50 = vector.load %arg5[%c0_49, %c2_50, %c0_51] : memref<2x10x64xf32, #tpu.memory_space<vmem>>, vector<2x8x64xf32>
    %51 = vector.shape_cast %50 : vector<2x8x64xf32> to vector<16x64xf32>
    %c128 = arith.constant 128 : index
    %c0_52 = arith.constant 0 : index
    %52 = vector.load %arg2[%c128, %c0_52] : memref<832x128xf32, #tpu.memory_space<vmem>>, vector<64x128xf32>
    %cst_53 = arith.constant dense<0.000000e+00> : vector<16x128xf32>
    %53 = tpu.matmul %51, %52, %cst_53 {dimension_numbers = #tpu.dot_dimension_numbers<[1], [0], [0], [1], [0, 0, 1, 1], [], []>} : vector<16x64xf32>, vector<64x128xf32>, vector<16x128xf32> -> vector<16x128xf32>
    %54 = arith.addf %49, %53 : vector<16x128xf32>
    %55 = vector.shape_cast %54 : vector<16x128xf32> to vector<2x4x2x128xf32>
    %cst_54 = arith.constant dense<0xFF800000> : vector<2x4x128xf32>
    %56 = vector.multi_reduction <maximumf>, %55, %cst_54 [2] : vector<2x4x2x128xf32> to vector<2x4x128xf32>
    %c4 = arith.constant 4 : index
    %c0_55 = arith.constant 0 : index
    %57 = vector.load %arg1[%c4, %c0_55] : memref<8x128xf32, #tpu.memory_space<vmem>>, vector<1x128xf32>
    %58 = vector.shape_cast %57 : vector<1x128xf32> to vector<1x1x128xf32>
    %59 = vector.broadcast %58 : vector<1x1x128xf32> to vector<2x4x128xf32>
    %60 = arith.addf %56, %59 : vector<2x4x128xf32>
    %cst_56 = arith.constant 0.000000e+00 : f32
    %61 = vector.broadcast %cst_56 : f32 to vector<2x4x128xf32>
    %62 = arith.maximumf %60, %61 : vector<2x4x128xf32>
    %63 = vector.shape_cast %62 : vector<2x4x128xf32> to vector<2x512xf32>
    %c192 = arith.constant 192 : index
    %c0_57 = arith.constant 0 : index
    %64 = vector.load %arg2[%c192, %c0_57] : memref<832x128xf32, #tpu.memory_space<vmem>>, vector<512x128xf32>
    %cst_58 = arith.constant dense<0.000000e+00> : vector<2x128xf32>
    %65 = tpu.matmul %63, %64, %cst_58 {dimension_numbers = #tpu.dot_dimension_numbers<[1], [0], [0], [1], [0, 0, 1, 1], [], []>} : vector<2x512xf32>, vector<512x128xf32>, vector<2x128xf32> -> vector<2x128xf32>
    %c5 = arith.constant 5 : index
    %c0_59 = arith.constant 0 : index
    %66 = vector.load %arg1[%c5, %c0_59] : memref<8x128xf32, #tpu.memory_space<vmem>>, vector<1x128xf32>
    %67 = vector.broadcast %66 : vector<1x128xf32> to vector<2x128xf32>
    %68 = arith.addf %65, %67 : vector<2x128xf32>
    %cst_60 = arith.constant 0.000000e+00 : f32
    %69 = vector.broadcast %cst_60 : f32 to vector<2x128xf32>
    %70 = arith.maximumf %68, %69 : vector<2x128xf32>
    %c704 = arith.constant 704 : index
    %c0_61 = arith.constant 0 : index
    %71 = vector.load %arg2[%c704, %c0_61] : memref<832x128xf32, #tpu.memory_space<vmem>>, vector<128x128xf32>
    %cst_62 = arith.constant dense<0.000000e+00> : vector<2x128xf32>
    %72 = tpu.matmul %70, %71, %cst_62 {dimension_numbers = #tpu.dot_dimension_numbers<[1], [0], [0], [1], [0, 0, 1, 1], [], []>} : vector<2x128xf32>, vector<128x128xf32>, vector<2x128xf32> -> vector<2x128xf32>
    %c6 = arith.constant 6 : index
    %c0_63 = arith.constant 0 : index
    %73 = vector.load %arg1[%c6, %c0_63] : memref<8x128xf32, #tpu.memory_space<vmem>>, vector<1x128xf32>
    %74 = vector.broadcast %73 : vector<1x128xf32> to vector<2x128xf32>
    %75 = arith.addf %72, %74 : vector<2x128xf32>
    %76 = vector.extract_strided_slice %75 {offsets = [0, 0], sizes = [2, 4], strides = [1, 1]} : vector<2x128xf32> to vector<2x4xf32>
    %c0_64 = arith.constant 0 : index
    %c0_65 = arith.constant 0 : index
    %77 = vector.load %arg3[%c0_64, %c0_65] : memref<2x4xf32, #tpu.memory_space<vmem>>, vector<2x4xf32>
    tpu.vector_store %arg3[%c0_64, %c0_65], %76 {strides = array<i32>} : memref<2x4xf32, #tpu.memory_space<vmem>>, vector<2x4xf32>,
    return
  }
}

</mosaic_0001>

<llo_original>
// kernel: emg_cnn_forward.1
$region0: #{emg_cnn_forward.1}
  #allocation0 [shape = 'u32[]', space=smem, size = 0x4, offset = 0x4, fixed_abs, tag = 'smem constant byte address 0x4 - core index']
  #allocation1 [shape = 'u32[144,128]{1,0:T(1,128)}', space=vmem, size = 0x12000, scoped, tag = 'internal scratch']
  #allocation2 [shape = 'f32[2,18,1]{2,1,0:T(8,128)}', space=vmem, size = 0x6000, scoped, tag = 'scratch operand']
  #allocation3 [shape = 'f32[2,10,64]{2,1,0:T(8,128)}', space=vmem, size = 0x4000, scoped, tag = 'scratch operand']
  %s0 = inlined_call_operand.vmem [shape: f32[2,16,1], index: 0, kind: input, shape index: {}]
  %s1 = inlined_call_operand.vmem [shape: f32[8,128], index: 1, kind: input, shape index: {}]
  %s2 = inlined_call_operand.hbm [shape: f32[832,128], index: 2, kind: input, shape index: {}]
  %s3 = inlined_call_operand.hbm [shape: f32[2,4], index: 3, kind: output, shape index: {}]
  %s4 = sld [smem:[#allocation0]]
  $region26: #{emg_cnn_forward.1} parent=0
    _
  %s6 = ssub.s32 1, %s4
  %s7 = scalar_select 0, %s6, %s4
  $region1: #{emg_cnn_forward.1} parent=0
    #allocation4 [shape = 'u8[425984]{0}', space=vmem, size = 0x68000, scoped, tag = 'input window, operand 2, single buffered']
    #allocation5 [shape = 's32[1]{0}', space=sflag, size = 0x4, scoped, tag = 'scoped memory for emg_cnn_forward.1']
    #allocation6 [shape = 's32[1]{0}', space=sflag, size = 0x4, scoped, tag = 'scoped memory for emg_cnn_forward.1']
    #allocation7 [shape = 'u8[1024]{0}', space=vmem, size = 0x400, scoped, tag = 'output window, operand 0, single buffered']
    %8 = vsyncpa [#allocation5], 0
    %9 = vsyncpa [#allocation6], 0
    // Predicated region
    $region2: #{emg_cnn_forward.1} parent=1 // pred_check
      _
    $region3: #{emg_cnn_forward.1} parent=1 // pred_check_branch
      %11 = sbr.rel (0) target = $region5
    $region4: #{emg_cnn_forward.1} parent=1 // pred_region
      _
    $region5: #{emg_cnn_forward.1} parent=1 // pred_fallthru
      _
    // Predicated region
    $region6: #{emg_cnn_forward.1} parent=1 // pred_check
      _
    $region7: #{emg_cnn_forward.1} parent=1 // pred_check_branch
      %13 = sbr.rel (0) target = $region9
    $region8: #{emg_cnn_forward.1} parent=1 // pred_region
      _
    $region9: #{emg_cnn_forward.1} parent=1 // pred_fallthru
      _
    // Predicated region
    $region10: #{emg_cnn_forward.1} parent=1 // pred_check
      _
    $region11: #{emg_cnn_forward.1} parent=1 // pred_check_branch
      %15 = sbr.rel (0) target = $region13
    $region12: #{emg_cnn_forward.1} parent=1 // pred_region
      %s17 = ssub.s32 13312, 13312
      %18 = vsyncadd [#allocation5], %s17
      %s19 = sshll.u32 [#allocation4], 4
      %s20 = int_to_ptr.vmem [resolvable:$true] %s19
      %25 = dma.hbm_to_vmem [thread:$0]  %s2, 13312, %s20, [#allocation5], 128, 128, 8
    $region13: #{emg_cnn_forward.1} parent=1 // pred_fallthru
      _
    // Predicated region
    $region14: #{emg_cnn_forward.1} parent=1 // pred_check
      _
    $region15: #{emg_cnn_forward.1} parent=1 // pred_check_branch
      %27 = sbr.rel (0) target = $region17
    $region16: #{emg_cnn_forward.1} parent=1 // pred_region
      %28 = dma.done [#allocation5], 13312
    $region17: #{emg_cnn_forward.1} parent=1 // pred_fallthru
      _
    %vm29 = vcmask 0
    %30 = vst.msk [vmem:[#allocation2] sm:$0x1] %vm29, 0.0
    %31 = vst.msk [vmem:[#allocation2 + $0x18] sm:$0x1] %vm29, 0.0
    %32 = vst.msk [vmem:[#allocation2 + $0x11] sm:$0x1] %vm29, 0.0
    %33 = vst.msk [vmem:[#allocation2 + $0x29] sm:$0x1] %vm29, 0.0
    %v34 = vld [vmem:[%s0] sm:$0xff]
    %v35 = vld [vmem:[%s0 + $0x8] sm:$0xff]
    %v36 = vld [vmem:[%s0 + $0x10] sm:$0xff]
    %v37 = vld [vmem:[%s0 + $0x18] sm:$0xff]
    %vm38 = vcmask 7168
    %39 = vst.msk [vmem:[#allocation2 + $0x1] sm:$0xff] %vm38, %v34
    %40 = vst.msk [vmem:[#allocation2 + $0x9] sm:$0xff] %vm38, %v35
    %41 = vst.msk [vmem:[#allocation2 + $0x19] sm:$0xff] %vm38, %v36
    %42 = vst.msk [vmem:[#allocation2 + $0x21] sm:$0xff] %vm38, %v37
    %v43 = vld [vmem:[#allocation2] sm:$0xff]
    %v44 = vld [vmem:[#allocation2 + $0x8] sm:$0xff]
    %v45 = vld [vmem:[#allocation2 + $0x18] sm:$0xff]
    %v46 = vld [vmem:[#allocation2 + $0x20] sm:$0xff]
    %v47 = vld [vmem:[%s1] sm:$0x1]
    %49 = vset.pattern.permute.xlu0 0
    %50 = vperm.xlu0 %49, %v43
    %v51 = vpop.permute.xlu0 %50
    %54 = vset.pattern.permute.xlu0 0
    %55 = vperm.xlu0 %54, %v44
    %v56 = vpop.permute.xlu0 %55
    %59 = vset.pattern.permute.xlu0 0
    %60 = vperm.xlu0 %59, %v45
    %v61 = vpop.permute.xlu0 %60
    %64 = vset.pattern.permute.xlu0 0
    %65 = vperm.xlu0 %64, %v46
    %v66 = vpop.permute.xlu0 %65
    %v68 = vlaneseq
    %v69 = vshrl.u32 %v68, 7
    %v70 = vsub.s32 0, %v69
    %v71 = vrot.slane %v47, %v70
    %v72 = vmul.f32 %v51, %v71
    %v73 = vmul.f32 %v56, %v71
    %v74 = vmul.f32 %v61, %v71
    %v75 = vmul.f32 %v66, %v71
    %v76 = vld [vmem:[#allocation2 + $0x1] sm:$0xff]
    %v77 = vld [vmem:[#allocation2 + $0x9] sm:$0xff]
    %v78 = vld [vmem:[#allocation2 + $0x19] sm:$0xff]
    %v79 = vld [vmem:[#allocation2 + $0x21] sm:$0xff]
    %v80 = vld [vmem:[%s1 + $0x1] sm:$0x1]
    %82 = vset.pattern.permute.xlu0 0
    %83 = vperm.xlu0 %82, %v76
    %v84 = vpop.permute.xlu0 %83
    %87 = vset.pattern.permute.xlu0 0
    %88 = vperm.xlu0 %87, %v77
    %v89 = vpop.permute.xlu0 %88
    %92 = vset.pattern.permute.xlu0 0
    %93 = vperm.xlu0 %92, %v78
    %v94 = vpop.permute.xlu0 %93
    %97 = vset.pattern.permute.xlu0 0
    %98 = vperm.xlu0 %97, %v79
    %v99 = vpop.permute.xlu0 %98
    %v101 = vlaneseq
    %v102 = vshrl.u32 %v101, 7
    %v103 = vsub.s32 0, %v102
    %v104 = vrot.slane %v80, %v103
    %v105 = vmul.f32 %v84, %v104
    %v106 = vmul.f32 %v89, %v104
    %v107 = vmul.f32 %v94, %v104
    %v108 = vmul.f32 %v99, %v104
    %v109 = vadd.f32 %v72, %v105
    %v110 = vadd.f32 %v73, %v106
    %v111 = vadd.f32 %v74, %v107
    %v112 = vadd.f32 %v75, %v108
    %v113 = vld [vmem:[#allocation2 + $0x2] sm:$0xff]
    %v114 = vld [vmem:[#allocation2 + $0xa] sm:$0xff]
    %v115 = vld [vmem:[#allocation2 + $0x1a] sm:$0xff]
    %v116 = vld [vmem:[#allocation2 + $0x22] sm:$0xff]
    %v117 = vld [vmem:[%s1 + $0x2] sm:$0x1]
    %119 = vset.pattern.permute.xlu0 0
    %120 = vperm.xlu0 %119, %v113
    %v121 = vpop.permute.xlu0 %120
    %124 = vset.pattern.permute.xlu0 0
    %125 = vperm.xlu0 %124, %v114
    %v126 = vpop.permute.xlu0 %125
    %129 = vset.pattern.permute.xlu0 0
    %130 = vperm.xlu0 %129, %v115
    %v131 = vpop.permute.xlu0 %130
    %134 = vset.pattern.permute.xlu0 0
    %135 = vperm.xlu0 %134, %v116
    %v136 = vpop.permute.xlu0 %135
    %v138 = vlaneseq
    %v139 = vshrl.u32 %v138, 7
    %v140 = vsub.s32 0, %v139
    %v141 = vrot.slane %v117, %v140
    %v142 = vmul.f32 %v121, %v141
    %v143 = vmul.f32 %v126, %v141
    %v144 = vmul.f32 %v131, %v141
    %v145 = vmul.f32 %v136, %v141
    %v146 = vadd.f32 %v109, %v142
    %v147 = vadd.f32 %v110, %v143
    %v148 = vadd.f32 %v111, %v144
    %v149 = vadd.f32 %v112, %v145
    %v154 = vcombine.high %v146, %v146
    %v156 = vunpack.c.l.s4 1983009808
    %v157 = vunpack.c.0.s8 %v156
    %v158 = vlaneseq
    %v159 = vshrl.u32 %v158, 7
    %v160 = vsub.s32 %v157, %v159
    %v161 = vrot.slane %v146, %v160
    %v163 = vunpack.c.l.s4 1983009808
    %v164 = vunpack.c.0.s8 %v163
    %v165 = vlaneseq
    %v166 = vshrl.u32 %v165, 7
    %v167 = vsub.s32 %v164, %v166
    %v168 = vrot.slane %v154, %v167
    %v169 = vcombine.high %v161, %v161
    %v170 = vcombine.high %v168, %v168
    %v171 = vcombine.high %v147, %v147
    %v173 = vunpack.c.l.s4 1983009808
    %v174 = vunpack.c.0.s8 %v173
    %v175 = vlaneseq
    %v176 = vshrl.u32 %v175, 7
    %v177 = vsub.s32 %v174, %v176
    %v178 = vrot.slane %v147, %v177
    %v180 = vunpack.c.l.s4 1983009808
    %v181 = vunpack.c.0.s8 %v180
    %v182 = vlaneseq
    %v183 = vshrl.u32 %v182, 7
    %v184 = vsub.s32 %v181, %v183
    %v185 = vrot.slane %v171, %v184
    %v186 = vcombine.high %v178, %v178
    %v187 = vcombine.high %v185, %v185
    %v188 = vcombine.high %v148, %v148
    %v190 = vunpack.c.l.s4 1983009808
    %v191 = vunpack.c.0.s8 %v190
    %v192 = vlaneseq
    %v193 = vshrl.u32 %v192, 7
    %v194 = vsub.s32 %v191, %v193
    %v195 = vrot.slane %v148, %v194
    %v197 = vunpack.c.l.s4 1983009808
    %v198 = vunpack.c.0.s8 %v197
    %v199 = vlaneseq
    %v200 = vshrl.u32 %v199, 7
    %v201 = vsub.s32 %v198, %v200
    %v202 = vrot.slane %v188, %v201
    %v203 = vcombine.high %v195, %v195
    %v204 = vcombine.high %v202, %v202
    %v205 = vcombine.high %v149, %v149
    %v207 = vunpack.c.l.s4 1983009808
    %v208 = vunpack.c.0.s8 %v207
    %v209 = vlaneseq
    %v210 = vshrl.u32 %v209, 7
    %v211 = vsub.s32 %v208, %v210
    %v212 = vrot.slane %v149, %v211
    %v214 = vunpack.c.l.s4 1983009808
    %v215 = vunpack.c.0.s8 %v214
    %v216 = vlaneseq
    %v217 = vshrl.u32 %v216, 7
    %v218 = vsub.s32 %v215, %v217
    %v219 = vrot.slane %v205, %v218
    %v220 = vcombine.high %v212, %v212
    %v221 = vcombine.high %v219, %v219
    %vm238 = vcmask 517120
    %v239 = vsel %vm238, %v161, -inf
    %v240 = vrot.slane %v239, 4
    %v241 = vmax.f32 %v239, %v240
    %v242 = vrot.slane %v241, 2
    %v243 = vmax.f32 %v241, %v242
    %v244 = vrot.slane %v243, 1
    %v245 = vmax.f32 %v243, %v244
    %v246 = vsel %vm238, %v169, -inf
    %v247 = vrot.slane %v246, 4
    %v248 = vmax.f32 %v246, %v247
    %v249 = vrot.slane %v248, 2
    %v250 = vmax.f32 %v248, %v249
    %v251 = vrot.slane %v250, 1
    %v252 = vmax.f32 %v250, %v251
    %v253 = vsel %vm238, %v168, -inf
    %v254 = vrot.slane %v253, 4
    %v255 = vmax.f32 %v253, %v254
    %v256 = vrot.slane %v255, 2
    %v257 = vmax.f32 %v255, %v256
    %v258 = vrot.slane %v257, 1
    %v259 = vmax.f32 %v257, %v258
    %v260 = vsel %vm238, %v170, -inf
    %v261 = vrot.slane %v260, 4
    %v262 = vmax.f32 %v260, %v261
    %v263 = vrot.slane %v262, 2
    %v264 = vmax.f32 %v262, %v263
    %v265 = vrot.slane %v264, 1
    %v266 = vmax.f32 %v264, %v265
    %v267 = vsel %vm238, %v178, -inf
    %v268 = vrot.slane %v267, 4
    %v269 = vmax.f32 %v267, %v268
    %v270 = vrot.slane %v269, 2
    %v271 = vmax.f32 %v269, %v270
    %v272 = vrot.slane %v271, 1
    %v273 = vmax.f32 %v271, %v272
    %v274 = vsel %vm238, %v186, -inf
    %v275 = vrot.slane %v274, 4
    %v276 = vmax.f32 %v274, %v275
    %v277 = vrot.slane %v276, 2
    %v278 = vmax.f32 %v276, %v277
    %v279 = vrot.slane %v278, 1
    %v280 = vmax.f32 %v278, %v279
    %v281 = vsel %vm238, %v185, -inf
    %v282 = vrot.slane %v281, 4
    %v283 = vmax.f32 %v281, %v282
    %v284 = vrot.slane %v283, 2
    %v285 = vmax.f32 %v283, %v284
    %v286 = vrot.slane %v285, 1
    %v287 = vmax.f32 %v285, %v286
    %v288 = vsel %vm238, %v187, -inf
    %v289 = vrot.slane %v288, 4
    %v290 = vmax.f32 %v288, %v289
    %v291 = vrot.slane %v290, 2
    %v292 = vmax.f32 %v290, %v291
    %v293 = vrot.slane %v292, 1
    %v294 = vmax.f32 %v292, %v293
    %v295 = vsel %vm238, %v195, -inf
    %v296 = vrot.slane %v295, 4
    %v297 = vmax.f32 %v295, %v296
    %v298 = vrot.slane %v297, 2
    %v299 = vmax.f32 %v297, %v298
    %v300 = vrot.slane %v299, 1
    %v301 = vmax.f32 %v299, %v300
    %v302 = vsel %vm238, %v203, -inf
    %v303 = vrot.slane %v302, 4
    %v304 = vmax.f32 %v302, %v303
    %v305 = vrot.slane %v304, 2
    %v306 = vmax.f32 %v304, %v305
    %v307 = vrot.slane %v306, 1
    %v308 = vmax.f32 %v306, %v307
    %v309 = vsel %vm238, %v202, -inf
    %v310 = vrot.slane %v309, 4
    %v311 = vmax.f32 %v309, %v310
    %v312 = vrot.slane %v311, 2
    %v313 = vmax.f32 %v311, %v312
    %v314 = vrot.slane %v313, 1
    %v315 = vmax.f32 %v313, %v314
    %v316 = vsel %vm238, %v204, -inf
    %v317 = vrot.slane %v316, 4
    %v318 = vmax.f32 %v316, %v317
    %v319 = vrot.slane %v318, 2
    %v320 = vmax.f32 %v318, %v319
    %v321 = vrot.slane %v320, 1
    %v322 = vmax.f32 %v320, %v321
    %v323 = vsel %vm238, %v212, -inf
    %v324 = vrot.slane %v323, 4
    %v325 = vmax.f32 %v323, %v324
    %v326 = vrot.slane %v325, 2
    %v327 = vmax.f32 %v325, %v326
    %v328 = vrot.slane %v327, 1
    %v329 = vmax.f32 %v327, %v328
    %v330 = vsel %vm238, %v220, -inf
    %v331 = vrot.slane %v330, 4
    %v332 = vmax.f32 %v330, %v331
    %v333 = vrot.slane %v332, 2
    %v334 = vmax.f32 %v332, %v333
    %v335 = vrot.slane %v334, 1
    %v336 = vmax.f32 %v334, %v335
    %v337 = vsel %vm238, %v219, -inf
    %v338 = vrot.slane %v337, 4
    %v339 = vmax.f32 %v337, %v338
    %v340 = vrot.slane %v339, 2
    %v341 = vmax.f32 %v339, %v340
    %v342 = vrot.slane %v341, 1
    %v343 = vmax.f32 %v341, %v342
    %v344 = vsel %vm238, %v221, -inf
    %v345 = vrot.slane %v344, 4
    %v346 = vmax.f32 %v344, %v345
    %v347 = vrot.slane %v346, 2
    %v348 = vmax.f32 %v346, %v347
    %v349 = vrot.slane %v348, 1
    %v350 = vmax.f32 %v348, %v349
    %v351 = vld [vmem:[%s1 + $0x3] sm:$0x1]
    %v352 = vlaneseq
    %v353 = vshrl.u32 %v352, 7
    %v354 = vsub.s32 0, %v353
    %v355 = vrot.slane %v351, %v354
    %v356 = vadd.f32 %v245, %v355
    %v357 = vadd.f32 %v252, %v355
    %v358 = vadd.f32 %v259, %v355
    %v359 = vadd.f32 %v266, %v355
    %v360 = vadd.f32 %v273, %v355
    %v361 = vadd.f32 %v280, %v355
    %v362 = vadd.f32 %v287, %v355
    %v363 = vadd.f32 %v294, %v355
    %v364 = vadd.f32 %v301, %v355
    %v365 = vadd.f32 %v308, %v355
    %v366 = vadd.f32 %v315, %v355
    %v367 = vadd.f32 %v322, %v355
    %v368 = vadd.f32 %v329, %v355
    %v369 = vadd.f32 %v336, %v355
    %v370 = vadd.f32 %v343, %v355
    %v371 = vadd.f32 %v350, %v355
    %v372 = vmax.f32 %v356, 0.0
    %v373 = vmax.f32 %v357, 0.0
    %v374 = vmax.f32 %v358, 0.0
    %v375 = vmax.f32 %v359, 0.0
    %v376 = vmax.f32 %v360, 0.0
    %v377 = vmax.f32 %v361, 0.0
    %v378 = vmax.f32 %v362, 0.0
    %v379 = vmax.f32 %v363, 0.0
    %v380 = vmax.f32 %v364, 0.0
    %v381 = vmax.f32 %v365, 0.0
    %v382 = vmax.f32 %v366, 0.0
    %v383 = vmax.f32 %v367, 0.0
    %v384 = vmax.f32 %v368, 0.0
    %v385 = vmax.f32 %v369, 0.0
    %v386 = vmax.f32 %v370, 0.0
    %v387 = vmax.f32 %v371, 0.0
    %vm388 = vcmask 516096
    %389 = vst.msk [vmem:[#allocation3] sm:$0x1] %vm388, 0.0
    %390 = vst.msk [vmem:[#allocation3 + $0x10] sm:$0x1] %vm388, 0.0
    %391 = vst.msk [vmem:[#allocation3 + $0x9] sm:$0x1] %vm388, 0.0
    %392 = vst.msk [vmem:[#allocation3 + $0x19] sm:$0x1] %vm388, 0.0
    %v409 = vrot.slane %v373, 7
    %vm410 = vcmask 1041409
    %v411 = vsel %vm410, %v409, %v372
    %v412 = vrot.slane %v374, 6
    %vm413 = vcmask 1042434
    %v414 = vsel %vm413, %v412, %v411
    %v415 = vrot.slane %v375, 5
    %vm416 = vcmask 1043459
    %v417 = vsel %vm416, %v415, %v414
    %v418 = vrot.slane %v376, 4
    %vm419 = vcmask 1044484
    %v420 = vsel %vm419, %v418, %v417
    %v421 = vrot.slane %v377, 3
    %vm422 = vcmask 1045509
    %v423 = vsel %vm422, %v421, %v420
    %v424 = vrot.slane %v378, 2
    %vm425 = vcmask 1046534
    %v426 = vsel %vm425, %v424, %v423
    %v427 = vrot.slane %v379, 1
    %vm428 = vcmask 1047559
    %v429 = vsel %vm428, %v427, %v426
    %v430 = vrot.slane %v381, 7
    %v431 = vsel %vm410, %v430, %v380
    %v432 = vrot.slane %v382, 6
    %v433 = vsel %vm413, %v432, %v431
    %v434 = vrot.slane %v383, 5
    %v435 = vsel %vm416, %v434, %v433
    %v436 = vrot.slane %v384, 4
    %v437 = vsel %vm419, %v436, %v435
    %v438 = vrot.slane %v385, 3
    %v439 = vsel %vm422, %v438, %v437
    %v440 = vrot.slane %v386, 2
    %v441 = vsel %vm425, %v440, %v439
    %v442 = vrot.slane %v387, 1
    %v443 = vsel %vm428, %v442, %v441
    %vm446 = vcmask 523264
    %447 = vst.msk [vmem:[#allocation3 + $0x1] sm:$0xff] %vm446, %v429
    %448 = vst.msk [vmem:[#allocation3 + $0x11] sm:$0xff] %vm446, %v443
    %v449 = vld [vmem:[#allocation3] sm:$0xff]
    %v450 = vld [vmem:[#allocation3 + $0x10] sm:$0xff]
    %v451 = vld [vmem:[#allocation4] sm:$0xff]
    %v452 = vld [vmem:[#allocation4 + $0x8] sm:$0xff]
    %v453 = vld [vmem:[#allocation4 + $0x10] sm:$0xff]
    %v454 = vld [vmem:[#allocation4 + $0x18] sm:$0xff]
    %v455 = vld [vmem:[#allocation4 + $0x20] sm:$0xff]
    %v456 = vld [vmem:[#allocation4 + $0x28] sm:$0xff]
    %v457 = vld [vmem:[#allocation4 + $0x30] sm:$0xff]
    %v458 = vld [vmem:[#allocation4 + $0x38] sm:$0xff]
    %v459 = vld [vmem:[#allocation3 + $0x1] sm:$0xff]
    %v460 = vld [vmem:[#allocation3 + $0x11] sm:$0xff]
    %v461 = vld [vmem:[#allocation4 + $0x40] sm:$0xff]
    %v462 = vld [vmem:[#allocation4 + $0x48] sm:$0xff]
    %v463 = vld [vmem:[#allocation4 + $0x50] sm:$0xff]
    %v464 = vld [vmem:[#allocation4 + $0x58] sm:$0xff]
    %v465 = vld [vmem:[#allocation4 + $0x60] sm:$0xff]
    %v466 = vld [vmem:[#allocation4 + $0x68] sm:$0xff]
    %v467 = vld [vmem:[#allocation4 + $0x70] sm:$0xff]
    %v468 = vld [vmem:[#allocation4 + $0x78] sm:$0xff]
    %v470 = vsel %vm446, %v459, 0
    %v473 = vsel %vm446, %v460, 0
    %475 = vmatprep.subr.mxu0 0.0
    %476 = vmatpush1.msra.mxu0 %v461
    %477 = vmatprep.subr.mxu0 0.0
    %478 = vmatpush1.msra.mxu0 %v462
    %479 = vmatprep.subr.mxu0 0.0
    %480 = vmatpush1.msra.mxu0 %v463
    %481 = vmatprep.subr.mxu0 0.0
    %482 = vmatpush1.msra.mxu0 %v464
    %483 = vmatprep.subr.mxu0 0.0
    %484 = vmatpush1.msra.mxu0 %v465
    %485 = vmatprep.subr.mxu0 0.0
    %486 = vmatpush1.msra.mxu0 %v466
    %487 = vmatprep.subr.mxu0 0.0
    %488 = vmatpush1.msra.mxu0 %v467
    %489 = vmatprep.subr.mxu0 0.0
    %490 = vmatpush1.msra.mxu0 %v468
    %491 = vmatprep.subr.mxu0 0.0
    %492 = vmatpush1.msra.mxu0 0.0
    %493 = vmatprep.subr.mxu0 0.0
    %494 = vmatpush1.msra.mxu0 0.0
    %495 = vmatprep.subr.mxu0 0.0
    %496 = vmatpush1.msra.mxu0 0.0
    %497 = vmatprep.subr.mxu0 0.0
    %498 = vmatpush1.msra.mxu0 0.0
    %499 = vmatprep.subr.mxu0 0.0
    %500 = vmatpush1.msra.mxu0 0.0
    %501 = vmatprep.subr.mxu0 0.0
    %502 = vmatpush1.msra.mxu0 0.0
    %503 = vmatprep.subr.mxu0 0.0
    %504 = vmatpush1.msra.mxu0 0.0
    %505 = vmatprep.subr.mxu0 0.0
    %506 = vmatpush1.msra.mxu0 0.0
    %507 = vmatprep.subr.mxu0 0.0
    %508 = vmatpush1.msra.mxu0 0.0
    %509 = vmatprep.subr.mxu0 0.0
    %510 = vmatpush1.msra.mxu0 0.0
    %511 = vmatprep.subr.mxu0 0.0
    %512 = vmatpush1.msra.mxu0 0.0
    %513 = vmatprep.subr.mxu0 0.0
    %514 = vmatpush1.msra.mxu0 0.0
    %515 = vmatprep.subr.mxu0 0.0
    %516 = vmatpush1.msra.mxu0 0.0
    %517 = vmatprep.subr.mxu0 0.0
    %518 = vmatpush1.msra.mxu0 0.0
    %519 = vmatprep.subr.mxu0 0.0
    %520 = vmatpush1.msra.mxu0 0.0
    %521 = vmatprep.subr.mxu0 0.0
    %522 = vmatpush1.msra.mxu0 0.0
    %523 = vmatprep.subr.mxu0 0.0
    %524 = vmatpush1.msra.mxu0 0.0
    %525 = vmatprep.subr.mxu0 0.0
    %526 = vmatpush1.msra.mxu0 0.0
    %527 = vmatprep.subr.mxu0 0.0
    %528 = vmatpush1.msra.mxu0 0.0
    %529 = vmatprep.subr.mxu0 0.0
    %530 = vmatpush1.msra.mxu0 0.0
    %531 = vmatprep.subr.mxu0 0.0
    %532 = vmatpush1.msra.mxu0 0.0
    %533 = vmatprep.subr.mxu0 0.0
    %534 = vmatpush1.msra.mxu0 0.0
    %535 = vmatprep.subr.mxu0 0.0
    %536 = vmatpush1.msra.mxu0 0.0
    %537 = vmatprep.subr.mxu0 0.0
    %538 = vmatpush1.msra.mxu0 0.0
    %539 = vmatprep.mubr.f32.mxu0 0.0
    %540 = vmatmul.mubr.f32.gmra.mrb[0].mxu0 %v470
    %v541 = vpop.f32.mrb[0].mxu0
    %v542 = vadd.f32 0.0, %v541
    %v543 = vpop.f32.mrb[0].mxu0
    %544 = vmatprep.mubr.f32.mxu0 0.0
    %545 = vmatmul.mubr.f32.gmra.mrb[0].mxu0 %v473
    %v546 = vpop.f32.mrb[0].mxu0
    %v547 = vadd.f32 0.0, %v546
    %v548 = vpop.f32.mrb[0].mxu0
    %549 = vdwg.mxu0
    %v551 = vsel %vm446, %v449, 0
    %v554 = vsel %vm446, %v450, 0
    %556 = vmatprep.subr.mxu0 0.0
    %557 = vmatpush1.msra.mxu0 %v451
    %558 = vmatprep.subr.mxu0 0.0
    %559 = vmatpush1.msra.mxu0 %v452
    %560 = vmatprep.subr.mxu0 0.0
    %561 = vmatpush1.msra.mxu0 %v453
    %562 = vmatprep.subr.mxu0 0.0
    %563 = vmatpush1.msra.mxu0 %v454
    %564 = vmatprep.subr.mxu0 0.0
    %565 = vmatpush1.msra.mxu0 %v455
    %566 = vmatprep.subr.mxu0 0.0
    %567 = vmatpush1.msra.mxu0 %v456
    %568 = vmatprep.subr.mxu0 0.0
    %569 = vmatpush1.msra.mxu0 %v457
    %570 = vmatprep.subr.mxu0 0.0
    %571 = vmatpush1.msra.mxu0 %v458
    %572 = vmatprep.subr.mxu0 0.0
    %573 = vmatpush1.msra.mxu0 0.0
    %574 = vmatprep.subr.mxu0 0.0
    %575 = vmatpush1.msra.mxu0 0.0
    %576 = vmatprep.subr.mxu0 0.0
    %577 = vmatpush1.msra.mxu0 0.0
    %578 = vmatprep.subr.mxu0 0.0
    %579 = vmatpush1.msra.mxu0 0.0
    %580 = vmatprep.subr.mxu0 0.0
    %581 = vmatpush1.msra.mxu0 0.0
    %582 = vmatprep.subr.mxu0 0.0
    %583 = vmatpush1.msra.mxu0 0.0
    %584 = vmatprep.subr.mxu0 0.0
    %585 = vmatpush1.msra.mxu0 0.0
    %586 = vmatprep.subr.mxu0 0.0
    %587 = vmatpush1.msra.mxu0 0.0
    %588 = vmatprep.subr.mxu0 0.0
    %589 = vmatpush1.msra.mxu0 0.0
    %590 = vmatprep.subr.mxu0 0.0
    %591 = vmatpush1.msra.mxu0 0.0
    %592 = vmatprep.subr.mxu0 0.0
    %593 = vmatpush1.msra.mxu0 0.0
    %594 = vmatprep.subr.mxu0 0.0
    %595 = vmatpush1.msra.mxu0 0.0
    %596 = vmatprep.subr.mxu0 0.0
    %597 = vmatpush1.msra.mxu0 0.0
    %598 = vmatprep.subr.mxu0 0.0
    %599 = vmatpush1.msra.mxu0 0.0
    %600 = vmatprep.subr.mxu0 0.0
    %601 = vmatpush1.msra.mxu0 0.0
    %602 = vmatprep.subr.mxu0 0.0
    %603 = vmatpush1.msra.mxu0 0.0
    %604 = vmatprep.subr.mxu0 0.0
    %605 = vmatpush1.msra.mxu0 0.0
    %606 = vmatprep.subr.mxu0 0.0
    %607 = vmatpush1.msra.mxu0 0.0
    %608 = vmatprep.subr.mxu0 0.0
    %609 = vmatpush1.msra.mxu0 0.0
    %610 = vmatprep.subr.mxu0 0.0
    %611 = vmatpush1.msra.mxu0 0.0
    %612 = vmatprep.subr.mxu0 0.0
    %613 = vmatpush1.msra.mxu0 0.0
    %614 = vmatprep.subr.mxu0 0.0
    %615 = vmatpush1.msra.mxu0 0.0
    %616 = vmatprep.subr.mxu0 0.0
    %617 = vmatpush1.msra.mxu0 0.0
    %618 = vmatprep.subr.mxu0 0.0
    %619 = vmatpush1.msra.mxu0 0.0
    %620 = vmatprep.mubr.f32.mxu0 0.0
    %621 = vmatmul.mubr.f32.gmra.mrb[0].mxu0 %v551
    %v622 = vpop.f32.mrb[0].mxu0
    %v623 = vadd.f32 %v542, %v622
    %v624 = vpop.f32.mrb[0].mxu0
    %625 = vmatprep.mubr.f32.mxu0 0.0
    %626 = vmatmul.mubr.f32.gmra.mrb[0].mxu0 %v554
    %v627 = vpop.f32.mrb[0].mxu0
    %v628 = vadd.f32 %v547, %v627
    %v629 = vpop.f32.mrb[0].mxu0
    %630 = vdwg.mxu0
    %v631 = vld [vmem:[#allocation3 + $0x2] sm:$0xff]
    %v632 = vld [vmem:[#allocation3 + $0x12] sm:$0xff]
    %v633 = vld [vmem:[#allocation4 + $0x80] sm:$0xff]
    %v634 = vld [vmem:[#allocation4 + $0x88] sm:$0xff]
    %v635 = vld [vmem:[#allocation4 + $0x90] sm:$0xff]
    %v636 = vld [vmem:[#allocation4 + $0x98] sm:$0xff]
    %v637 = vld [vmem:[#allocation4 + $0xa0] sm:$0xff]
    %v638 = vld [vmem:[#allocation4 + $0xa8] sm:$0xff]
    %v639 = vld [vmem:[#allocation4 + $0xb0] sm:$0xff]
    %v640 = vld [vmem:[#allocation4 + $0xb8] sm:$0xff]
    %v642 = vsel %vm446, %v631, 0
    %v645 = vsel %vm446, %v632, 0
    %647 = vmatprep.subr.mxu0 0.0
    %648 = vmatpush1.msra.mxu0 %v633
    %649 = vmatprep.subr.mxu0 0.0
    %650 = vmatpush1.msra.mxu0 %v634
    %651 = vmatprep.subr.mxu0 0.0
    %652 = vmatpush1.msra.mxu0 %v635
    %653 = vmatprep.subr.mxu0 0.0
    %654 = vmatpush1.msra.mxu0 %v636
    %655 = vmatprep.subr.mxu0 0.0
    %656 = vmatpush1.msra.mxu0 %v637
    %657 = vmatprep.subr.mxu0 0.0
    %658 = vmatpush1.msra.mxu0 %v638
    %659 = vmatprep.subr.mxu0 0.0
    %660 = vmatpush1.msra.mxu0 %v639
    %661 = vmatprep.subr.mxu0 0.0
    %662 = vmatpush1.msra.mxu0 %v640
    %663 = vmatprep.subr.mxu0 0.0
    %664 = vmatpush1.msra.mxu0 0.0
    %665 = vmatprep.subr.mxu0 0.0
    %666 = vmatpush1.msra.mxu0 0.0
    %667 = vmatprep.subr.mxu0 0.0
    %668 = vmatpush1.msra.mxu0 0.0
    %669 = vmatprep.subr.mxu0 0.0
    %670 = vmatpush1.msra.mxu0 0.0
    %671 = vmatprep.subr.mxu0 0.0
    %672 = vmatpush1.msra.mxu0 0.0
    %673 = vmatprep.subr.mxu0 0.0
    %674 = vmatpush1.msra.mxu0 0.0
    %675 = vmatprep.subr.mxu0 0.0
    %676 = vmatpush1.msra.mxu0 0.0
    %677 = vmatprep.subr.mxu0 0.0
    %678 = vmatpush1.msra.mxu0 0.0
    %679 = vmatprep.subr.mxu0 0.0
    %680 = vmatpush1.msra.mxu0 0.0
    %681 = vmatprep.subr.mxu0 0.0
    %682 = vmatpush1.msra.mxu0 0.0
    %683 = vmatprep.subr.mxu0 0.0
    %684 = vmatpush1.msra.mxu0 0.0
    %685 = vmatprep.subr.mxu0 0.0
    %686 = vmatpush1.msra.mxu0 0.0
    %687 = vmatprep.subr.mxu0 0.0
    %688 = vmatpush1.msra.mxu0 0.0
    %689 = vmatprep.subr.mxu0 0.0
    %690 = vmatpush1.msra.mxu0 0.0
    %691 = vmatprep.subr.mxu0 0.0
    %692 = vmatpush1.msra.mxu0 0.0
    %693 = vmatprep.subr.mxu0 0.0
    %694 = vmatpush1.msra.mxu0 0.0
    %695 = vmatprep.subr.mxu0 0.0
    %696 = vmatpush1.msra.mxu0 0.0
    %697 = vmatprep.subr.mxu0 0.0
    %698 = vmatpush1.msra.mxu0 0.0
    %699 = vmatprep.subr.mxu0 0.0
    %700 = vmatpush1.msra.mxu0 0.0
    %701 = vmatprep.subr.mxu0 0.0
    %702 = vmatpush1.msra.mxu0 0.0
    %703 = vmatprep.subr.mxu0 0.0
    %704 = vmatpush1.msra.mxu0 0.0
    %705 = vmatprep.subr.mxu0 0.0
    %706 = vmatpush1.msra.mxu0 0.0
    %707 = vmatprep.subr.mxu0 0.0
    %708 = vmatpush1.msra.mxu0 0.0
    %709 = vmatprep.subr.mxu0 0.0
    %710 = vmatpush1.msra.mxu0 0.0
    %711 = vmatprep.mubr.f32.mxu0 0.0
    %712 = vmatmul.mubr.f32.gmra.mrb[0].mxu0 %v642
    %v713 = vpop.f32.mrb[0].mxu0
    %v714 = vadd.f32 0.0, %v713
    %v715 = vpop.f32.mrb[0].mxu0
    %716 = vmatprep.mubr.f32.mxu0 0.0
    %717 = vmatmul.mubr.f32.gmra.mrb[0].mxu0 %v645
    %v718 = vpop.f32.mrb[0].mxu0
    %v719 = vadd.f32 0.0, %v718
    %v720 = vpop.f32.mrb[0].mxu0
    %721 = vdwg.mxu0
    %v722 = vadd.f32 %v623, %v714
    %v723 = vadd.f32 %v628, %v719
    %v726 = vcombine.high %v722, %v722
    %v728 = vunpack.c.l.s4 1983009808
    %v729 = vunpack.c.0.s8 %v728
    %v730 = vlaneseq
    %v731 = vshrl.u32 %v730, 7
    %v732 = vsub.s32 %v729, %v731
    %v733 = vrot.slane %v722, %v732
    %v735 = vunpack.c.l.s4 1983009808
    %v736 = vunpack.c.0.s8 %v735
    %v737 = vlaneseq
    %v738 = vshrl.u32 %v737, 7
    %v739 = vsub.s32 %v736, %v738
    %v740 = vrot.slane %v726, %v739
    %v741 = vcombine.high %v733, %v733
    %v742 = vcombine.high %v740, %v740
    %v743 = vcombine.high %v723, %v723
    %v745 = vunpack.c.l.s4 1983009808
    %v746 = vunpack.c.0.s8 %v745
    %v747 = vlaneseq
    %v748 = vshrl.u32 %v747, 7
    %v749 = vsub.s32 %v746, %v748
    %v750 = vrot.slane %v723, %v749
    %v752 = vunpack.c.l.s4 1983009808
    %v753 = vunpack.c.0.s8 %v752
    %v754 = vlaneseq
    %v755 = vshrl.u32 %v754, 7
    %v756 = vsub.s32 %v753, %v755
    %v757 = vrot.slane %v743, %v756
    %v758 = vcombine.high %v750, %v750
    %v759 = vcombine.high %v757, %v757
    %vm768 = vcmask 1041408
    %v769 = vsel %vm768, %v733, -inf
    %v770 = vrot.slane %v769, 4
    %v771 = vmax.f32 %v769, %v770
    %v772 = vrot.slane %v771, 2
    %v773 = vmax.f32 %v771, %v772
    %v774 = vrot.slane %v773, 1
    %v775 = vmax.f32 %v773, %v774
    %v776 = vsel %vm768, %v741, -inf
    %v777 = vrot.slane %v776, 4
    %v778 = vmax.f32 %v776, %v777
    %v779 = vrot.slane %v778, 2
    %v780 = vmax.f32 %v778, %v779
    %v781 = vrot.slane %v780, 1
    %v782 = vmax.f32 %v780, %v781
    %v783 = vsel %vm768, %v740, -inf
    %v784 = vrot.slane %v783, 4
    %v785 = vmax.f32 %v783, %v784
    %v786 = vrot.slane %v785, 2
    %v787 = vmax.f32 %v785, %v786
    %v788 = vrot.slane %v787, 1
    %v789 = vmax.f32 %v787, %v788
    %v790 = vsel %vm768, %v742, -inf
    %v791 = vrot.slane %v790, 4
    %v792 = vmax.f32 %v790, %v791
    %v793 = vrot.slane %v792, 2
    %v794 = vmax.f32 %v792, %v793
    %v795 = vrot.slane %v794, 1
    %v796 = vmax.f32 %v794, %v795
    %v797 = vsel %vm768, %v750, -inf
    %v798 = vrot.slane %v797, 4
    %v799 = vmax.f32 %v797, %v798
    %v800 = vrot.slane %v799, 2
    %v801 = vmax.f32 %v799, %v800
    %v802 = vrot.slane %v801, 1
    %v803 = vmax.f32 %v801, %v802
    %v804 = vsel %vm768, %v758, -inf
    %v805 = vrot.slane %v804, 4
    %v806 = vmax.f32 %v804, %v805
    %v807 = vrot.slane %v806, 2
    %v808 = vmax.f32 %v806, %v807
    %v809 = vrot.slane %v808, 1
    %v810 = vmax.f32 %v808, %v809
    %v811 = vsel %vm768, %v757, -inf
    %v812 = vrot.slane %v811, 4
    %v813 = vmax.f32 %v811, %v812
    %v814 = vrot.slane %v813, 2
    %v815 = vmax.f32 %v813, %v814
    %v816 = vrot.slane %v815, 1
    %v817 = vmax.f32 %v815, %v816
    %v818 = vsel %vm768, %v759, -inf
    %v819 = vrot.slane %v818, 4
    %v820 = vmax.f32 %v818, %v819
    %v821 = vrot.slane %v820, 2
    %v822 = vmax.f32 %v820, %v821
    %v823 = vrot.slane %v822, 1
    %v824 = vmax.f32 %v822, %v823
    %v825 = vld [vmem:[%s1 + $0x4] sm:$0x1]
    %v826 = vlaneseq
    %v827 = vshrl.u32 %v826, 7
    %v828 = vsub.s32 0, %v827
    %v829 = vrot.slane %v825, %v828
    %v830 = vadd.f32 %v775, %v829
    %v831 = vadd.f32 %v782, %v829
    %v832 = vadd.f32 %v789, %v829
    %v833 = vadd.f32 %v796, %v829
    %v834 = vadd.f32 %v803, %v829
    %v835 = vadd.f32 %v810, %v829
    %v836 = vadd.f32 %v817, %v829
    %v837 = vadd.f32 %v824, %v829
    %v838 = vmax.f32 %v830, 0.0
    %v839 = vmax.f32 %v831, 0.0
    %v840 = vmax.f32 %v832, 0.0
    %v841 = vmax.f32 %v833, 0.0
    %v842 = vmax.f32 %v834, 0.0
    %v843 = vmax.f32 %v835, 0.0
    %v844 = vmax.f32 %v836, 0.0
    %v845 = vmax.f32 %v837, 0.0
    %v854 = vrot.slane %v839, 7
    %v855 = vsel %vm410, %v854, %v838
    %v856 = vrot.slane %v840, 6
    %v857 = vsel %vm413, %v856, %v855
    %v858 = vrot.slane %v841, 5
    %v859 = vsel %vm416, %v858, %v857
    %v860 = vrot.slane %v843, 7
    %v861 = vsel %vm410, %v860, %v842
    %v862 = vrot.slane %v844, 6
    %v863 = vsel %vm413, %v862, %v861
    %v864 = vrot.slane %v845, 5
    %v865 = vsel %vm416, %v864, %v863
    %v868 = vunpack.c.l.s4 1983009808
    %v869 = vunpack.c.0.s8 %v868
    %v870 = vlaneseq
    %v871 = vshrl.u32 %v870, 7
    %v872 = vsub.s32 %v869, %v871
    %v873 = vrot.slane %v859, %v872
    %v876 = vunpack.c.l.s4 1983009808
    %v877 = vunpack.c.0.s8 %v876
    %v878 = vlaneseq
    %v879 = vshrl.u32 %v878, 7
    %v880 = vsub.s32 %v877, %v879
    %v881 = vrot.slane %v865, %v880
    %v882 = vcombine.low %v873, %v881
    %v883 = vcombine.high %v873, %v881
    %v885 = vunpack.c.l.s4 1934713408
    %v886 = vunpack.c.0.s8 %v885
    %v887 = vlaneseq
    %v888 = vshrl.u32 %v887, 7
    %v889 = vsub.s32 %v886, %v888
    %v890 = vrot.slane %v882, %v889
    %v892 = vunpack.c.l.s4 1934713408
    %v893 = vunpack.c.0.s8 %v892
    %v894 = vlaneseq
    %v895 = vshrl.u32 %v894, 7
    %v896 = vsub.s32 %v893, %v895
    %v897 = vrot.slane %v883, %v896
    %v898 = vcombine.high %v890, 0.0
    %v899 = vcombine.high %v897, 0.0
    %v900 = vld [vmem:[#allocation4 + $0xc0] sm:$0xff]
    %v901 = vld [vmem:[#allocation4 + $0xc8] sm:$0xff]
    %v902 = vld [vmem:[#allocation4 + $0xd0] sm:$0xff]
    %v903 = vld [vmem:[#allocation4 + $0xd8] sm:$0xff]
    %v904 = vld [vmem:[#allocation4 + $0xe0] sm:$0xff]
    %v905 = vld [vmem:[#allocation4 + $0xe8] sm:$0xff]
    %v906 = vld [vmem:[#allocation4 + $0xf0] sm:$0xff]
    %v907 = vld [vmem:[#allocation4 + $0xf8] sm:$0xff]
    %v908 = vld [vmem:[#allocation4 + $0x100] sm:$0xff]
    %v909 = vld [vmem:[#allocation4 + $0x108] sm:$0xff]
    %v910 = vld [vmem:[#allocation4 + $0x110] sm:$0xff]
    %v911 = vld [vmem:[#allocation4 + $0x118] sm:$0xff]
    %v912 = vld [vmem:[#allocation4 + $0x120] sm:$0xff]
    %v913 = vld [vmem:[#allocation4 + $0x128] sm:$0xff]
    %v914 = vld [vmem:[#allocation4 + $0x130] sm:$0xff]
    %v915 = vld [vmem:[#allocation4 + $0x138] sm:$0xff]
    %v916 = vld [vmem:[#allocation4 + $0x140] sm:$0xff]
    %v917 = vld [vmem:[#allocation4 + $0x148] sm:$0xff]
    %v918 = vld [vmem:[#allocation4 + $0x150] sm:$0xff]
    %v919 = vld [vmem:[#allocation4 + $0x158] sm:$0xff]
    %v920 = vld [vmem:[#allocation4 + $0x160] sm:$0xff]
    %v921 = vld [vmem:[#allocation4 + $0x168] sm:$0xff]
    %v922 = vld [vmem:[#allocation4 + $0x170] sm:$0xff]
    %v923 = vld [vmem:[#allocation4 + $0x178] sm:$0xff]
    %v924 = vld [vmem:[#allocation4 + $0x180] sm:$0xff]
    %v925 = vld [vmem:[#allocation4 + $0x188] sm:$0xff]
    %v926 = vld [vmem:[#allocation4 + $0x190] sm:$0xff]
    %v927 = vld [vmem:[#allocation4 + $0x198] sm:$0xff]
    %v928 = vld [vmem:[#allocation4 + $0x1a0] sm:$0xff]
    %v929 = vld [vmem:[#allocation4 + $0x1a8] sm:$0xff]
    %v930 = vld [vmem:[#allocation4 + $0x1b0] sm:$0xff]
    %v931 = vld [vmem:[#allocation4 + $0x1b8] sm:$0xff]
    %v932 = vld [vmem:[#allocation4 + $0x1c0] sm:$0xff]
    %v933 = vld [vmem:[#allocation4 + $0x1c8] sm:$0xff]
    %v934 = vld [vmem:[#allocation4 + $0x1d0] sm:$0xff]
    %v935 = vld [vmem:[#allocation4 + $0x1d8] sm:$0xff]
    %v936 = vld [vmem:[#allocation4 + $0x1e0] sm:$0xff]
    %v937 = vld [vmem:[#allocation4 + $0x1e8] sm:$0xff]
    %v938 = vld [vmem:[#allocation4 + $0x1f0] sm:$0xff]
    %v939 = vld [vmem:[#allocation4 + $0x1f8] sm:$0xff]
    %v940 = vld [vmem:[#allocation4 + $0x200] sm:$0xff]
    %v941 = vld [vmem:[#allocation4 + $0x208] sm:$0xff]
    %v942 = vld [vmem:[#allocation4 + $0x210] sm:$0xff]
    %v943 = vld [vmem:[#allocation4 + $0x218] sm:$0xff]
    %v944 = vld [vmem:[#allocation4 + $0x220] sm:$0xff]
    %v945 = vld [vmem:[#allocation4 + $0x228] sm:$0xff]
    %v946 = vld [vmem:[#allocation4 + $0x230] sm:$0xff]
    %v947 = vld [vmem:[#allocation4 + $0x238] sm:$0xff]
    %v948 = vld [vmem:[#allocation4 + $0x240] sm:$0xff]
    %v949 = vld [vmem:[#allocation4 + $0x248] sm:$0xff]
    %v950 = vld [vmem:[#allocation4 + $0x250] sm:$0xff]
    %v951 = vld [vmem:[#allocation4 + $0x258] sm:$0xff]
    %v952 = vld [vmem:[#allocation4 + $0x260] sm:$0xff]
    %v953 = vld [vmem:[#allocation4 + $0x268] sm:$0xff]
    %v954 = vld [vmem:[#allocation4 + $0x270] sm:$0xff]
    %v955 = vld [vmem:[#allocation4 + $0x278] sm:$0xff]
    %v956 = vld [vmem:[#allocation4 + $0x280] sm:$0xff]
    %v957 = vld [vmem:[#allocation4 + $0x288] sm:$0xff]
    %v958 = vld [vmem:[#allocation4 + $0x290] sm:$0xff]
    %v959 = vld [vmem:[#allocation4 + $0x298] sm:$0xff]
    %v960 = vld [vmem:[#allocation4 + $0x2a0] sm:$0xff]
    %v961 = vld [vmem:[#allocation4 + $0x2a8] sm:$0xff]
    %v962 = vld [vmem:[#allocation4 + $0x2b0] sm:$0xff]
    %v963 = vld [vmem:[#allocation4 + $0x2b8] sm:$0xff]
    %v964 = vld [vmem:[%s1 + $0x5] sm:$0x1]
    %v965 = vlaneseq
    %v966 = vshrl.u32 %v965, 7
    %v967 = vsub.s32 0, %v966
    %v968 = vrot.slane %v964, %v967
    %969 = vmatprep.subr.mxu0 0.0
    %970 = vmatpush1.msra.mxu0 %v900
    %971 = vmatprep.subr.mxu0 0.0
    %972 = vmatpush1.msra.mxu0 %v901
    %973 = vmatprep.subr.mxu0 0.0
    %974 = vmatpush1.msra.mxu0 %v902
    %975 = vmatprep.subr.mxu0 0.0
    %976 = vmatpush1.msra.mxu0 %v903
    %977 = vmatprep.subr.mxu0 0.0
    %978 = vmatpush1.msra.mxu0 %v904
    %979 = vmatprep.subr.mxu0 0.0
    %980 = vmatpush1.msra.mxu0 %v905
    %981 = vmatprep.subr.mxu0 0.0
    %982 = vmatpush1.msra.mxu0 %v906
    %983 = vmatprep.subr.mxu0 0.0
    %984 = vmatpush1.msra.mxu0 %v907
    %985 = vmatprep.subr.mxu0 0.0
    %986 = vmatpush1.msra.mxu0 %v908
    %987 = vmatprep.subr.mxu0 0.0
    %988 = vmatpush1.msra.mxu0 %v909
    %989 = vmatprep.subr.mxu0 0.0
    %990 = vmatpush1.msra.mxu0 %v910
    %991 = vmatprep.subr.mxu0 0.0
    %992 = vmatpush1.msra.mxu0 %v911
    %993 = vmatprep.subr.mxu0 0.0
    %994 = vmatpush1.msra.mxu0 %v912
    %995 = vmatprep.subr.mxu0 0.0
    %996 = vmatpush1.msra.mxu0 %v913
    %997 = vmatprep.subr.mxu0 0.0
    %998 = vmatpush1.msra.mxu0 %v914
    %999 = vmatprep.subr.mxu0 0.0
    %1000 = vmatpush1.msra.mxu0 %v915
    %1001 = vmatprep.subr.mxu0 0.0
    %1002 = vmatpush1.msra.mxu0 %v916
    %1003 = vmatprep.subr.mxu0 0.0
    %1004 = vmatpush1.msra.mxu0 %v917
    %1005 = vmatprep.subr.mxu0 0.0
    %1006 = vmatpush1.msra.mxu0 %v918
    %1007 = vmatprep.subr.mxu0 0.0
    %1008 = vmatpush1.msra.mxu0 %v919
    %1009 = vmatprep.subr.mxu0 0.0
    %1010 = vmatpush1.msra.mxu0 %v920
    %1011 = vmatprep.subr.mxu0 0.0
    %1012 = vmatpush1.msra.mxu0 %v921
    %1013 = vmatprep.subr.mxu0 0.0
    %1014 = vmatpush1.msra.mxu0 %v922
    %1015 = vmatprep.subr.mxu0 0.0
    %1016 = vmatpush1.msra.mxu0 %v923
    %1017 = vmatprep.subr.mxu0 0.0
    %1018 = vmatpush1.msra.mxu0 %v924
    %1019 = vmatprep.subr.mxu0 0.0
    %1020 = vmatpush1.msra.mxu0 %v925
    %1021 = vmatprep.subr.mxu0 0.0
    %1022 = vmatpush1.msra.mxu0 %v926
    %1023 = vmatprep.subr.mxu0 0.0
    %1024 = vmatpush1.msra.mxu0 %v927
    %1025 = vmatprep.subr.mxu0 0.0
    %1026 = vmatpush1.msra.mxu0 %v928
    %1027 = vmatprep.subr.mxu0 0.0
    %1028 = vmatpush1.msra.mxu0 %v929
    %1029 = vmatprep.subr.mxu0 0.0
    %1030 = vmatpush1.msra.mxu0 %v930
    %1031 = vmatprep.subr.mxu0 0.0
    %1032 = vmatpush1.msra.mxu0 %v931
    %1033 = vmatprep.mubr.f32.mxu0 %v898
    %1034 = vmatmul.mubr.f32.gmra.mrb[0].mxu0 %v890
    %v1035 = vpop.f32.mrb[0].mxu0
    %v1036 = vadd.f32 %v968, %v1035
    %v1037 = vpop.f32.mrb[0].mxu0
    %1038 = vdwg.mxu0
    %1039 = vmatprep.subr.mxu0 0.0
    %1040 = vmatpush1.msra.mxu0 %v932
    %1041 = vmatprep.subr.mxu0 0.0
    %1042 = vmatpush1.msra.mxu0 %v933
    %1043 = vmatprep.subr.mxu0 0.0
    %1044 = vmatpush1.msra.mxu0 %v934
    %1045 = vmatprep.subr.mxu0 0.0
    %1046 = vmatpush1.msra.mxu0 %v935
    %1047 = vmatprep.subr.mxu0 0.0
    %1048 = vmatpush1.msra.mxu0 %v936
    %1049 = vmatprep.subr.mxu0 0.0
    %1050 = vmatpush1.msra.mxu0 %v937
    %1051 = vmatprep.subr.mxu0 0.0
    %1052 = vmatpush1.msra.mxu0 %v938
    %1053 = vmatprep.subr.mxu0 0.0
    %1054 = vmatpush1.msra.mxu0 %v939
    %1055 = vmatprep.subr.mxu0 0.0
    %1056 = vmatpush1.msra.mxu0 %v940
    %1057 = vmatprep.subr.mxu0 0.0
    %1058 = vmatpush1.msra.mxu0 %v941
    %1059 = vmatprep.subr.mxu0 0.0
    %1060 = vmatpush1.msra.mxu0 %v942
    %1061 = vmatprep.subr.mxu0 0.0
    %1062 = vmatpush1.msra.mxu0 %v943
    %1063 = vmatprep.subr.mxu0 0.0
    %1064 = vmatpush1.msra.mxu0 %v944
    %1065 = vmatprep.subr.mxu0 0.0
    %1066 = vmatpush1.msra.mxu0 %v945
    %1067 = vmatprep.subr.mxu0 0.0
    %1068 = vmatpush1.msra.mxu0 %v946
    %1069 = vmatprep.subr.mxu0 0.0
    %1070 = vmatpush1.msra.mxu0 %v947
    %1071 = vmatprep.subr.mxu0 0.0
    %1072 = vmatpush1.msra.mxu0 %v948
    %1073 = vmatprep.subr.mxu0 0.0
    %1074 = vmatpush1.msra.mxu0 %v949
    %1075 = vmatprep.subr.mxu0 0.0
    %1076 = vmatpush1.msra.mxu0 %v950
    %1077 = vmatprep.subr.mxu0 0.0
    %1078 = vmatpush1.msra.mxu0 %v951
    %1079 = vmatprep.subr.mxu0 0.0
    %1080 = vmatpush1.msra.mxu0 %v952
    %1081 = vmatprep.subr.mxu0 0.0
    %1082 = vmatpush1.msra.mxu0 %v953
    %1083 = vmatprep.subr.mxu0 0.0
    %1084 = vmatpush1.msra.mxu0 %v954
    %1085 = vmatprep.subr.mxu0 0.0
    %1086 = vmatpush1.msra.mxu0 %v955
    %1087 = vmatprep.subr.mxu0 0.0
    %1088 = vmatpush1.msra.mxu0 %v956
    %1089 = vmatprep.subr.mxu0 0.0
    %1090 = vmatpush1.msra.mxu0 %v957
    %1091 = vmatprep.subr.mxu0 0.0
    %1092 = vmatpush1.msra.mxu0 %v958
    %1093 = vmatprep.subr.mxu0 0.0
    %1094 = vmatpush1.msra.mxu0 %v959
    %1095 = vmatprep.subr.mxu0 0.0
    %1096 = vmatpush1.msra.mxu0 %v960
    %1097 = vmatprep.subr.mxu0 0.0
    %1098 = vmatpush1.msra.mxu0 %v961
    %1099 = vmatprep.subr.mxu0 0.0
    %1100 = vmatpush1.msra.mxu0 %v962
    %1101 = vmatprep.subr.mxu0 0.0
    %1102 = vmatpush1.msra.mxu0 %v963
    %1103 = vmatprep.mubr.f32.mxu0 %v899
    %1104 = vmatmul.mubr.f32.gmra.mrb[0].mxu0 %v897
    %v1105 = vpop.f32.mrb[0].mxu0
    %v1106 = vadd.f32 %v1036, %v1105
    %v1107 = vpop.f32.mrb[0].mxu0
    %1108 = vdwg.mxu0
    %v1109 = vmax.f32 %v1106, 0.0
    %v1110 = vld [vmem:[#allocation4 + $0x2c0] sm:$0xff]
    %v1111 = vld [vmem:[#allocation4 + $0x2c8] sm:$0xff]
    %v1112 = vld [vmem:[#allocation4 + $0x2d0] sm:$0xff]
    %v1113 = vld [vmem:[#allocation4 + $0x2d8] sm:$0xff]
    %v1114 = vld [vmem:[#allocation4 + $0x2e0] sm:$0xff]
    %v1115 = vld [vmem:[#allocation4 + $0x2e8] sm:$0xff]
    %v1116 = vld [vmem:[#allocation4 + $0x2f0] sm:$0xff]
    %v1117 = vld [vmem:[#allocation4 + $0x2f8] sm:$0xff]
    %v1118 = vld [vmem:[#allocation4 + $0x300] sm:$0xff]
    %v1119 = vld [vmem:[#allocation4 + $0x308] sm:$0xff]
    %v1120 = vld [vmem:[#allocation4 + $0x310] sm:$0xff]
    %v1121 = vld [vmem:[#allocation4 + $0x318] sm:$0xff]
    %v1122 = vld [vmem:[#allocation4 + $0x320] sm:$0xff]
    %v1123 = vld [vmem:[#allocation4 + $0x328] sm:$0xff]
    %v1124 = vld [vmem:[#allocation4 + $0x330] sm:$0xff]
    %v1125 = vld [vmem:[#allocation4 + $0x338] sm:$0xff]
    %v1126 = vld [vmem:[%s1 + $0x6] sm:$0x1]
    %v1127 = vlaneseq
    %v1128 = vshrl.u32 %v1127, 7
    %v1129 = vsub.s32 0, %v1128
    %v1130 = vrot.slane %v1126, %v1129
    %1131 = vmatprep.subr.mxu0 0.0
    %1132 = vmatpush1.msra.mxu0 %v1110
    %1133 = vmatprep.subr.mxu0 0.0
    %1134 = vmatpush1.msra.mxu0 %v1111
    %1135 = vmatprep.subr.mxu0 0.0
    %1136 = vmatpush1.msra.mxu0 %v1112
    %1137 = vmatprep.subr.mxu0 0.0
    %1138 = vmatpush1.msra.mxu0 %v1113
    %1139 = vmatprep.subr.mxu0 0.0
    %1140 = vmatpush1.msra.mxu0 %v1114
    %1141 = vmatprep.subr.mxu0 0.0
    %1142 = vmatpush1.msra.mxu0 %v1115
    %1143 = vmatprep.subr.mxu0 0.0
    %1144 = vmatpush1.msra.mxu0 %v1116
    %1145 = vmatprep.subr.mxu0 0.0
    %1146 = vmatpush1.msra.mxu0 %v1117
    %1147 = vmatprep.subr.mxu0 0.0
    %1148 = vmatpush1.msra.mxu0 %v1118
    %1149 = vmatprep.subr.mxu0 0.0
    %1150 = vmatpush1.msra.mxu0 %v1119
    %1151 = vmatprep.subr.mxu0 0.0
    %1152 = vmatpush1.msra.mxu0 %v1120
    %1153 = vmatprep.subr.mxu0 0.0
    %1154 = vmatpush1.msra.mxu0 %v1121
    %1155 = vmatprep.subr.mxu0 0.0
    %1156 = vmatpush1.msra.mxu0 %v1122
    %1157 = vmatprep.subr.mxu0 0.0
    %1158 = vmatpush1.msra.mxu0 %v1123
    %1159 = vmatprep.subr.mxu0 0.0
    %1160 = vmatpush1.msra.mxu0 %v1124
    %1161 = vmatprep.subr.mxu0 0.0
    %1162 = vmatpush1.msra.mxu0 %v1125
    %1163 = vmatprep.subr.mxu0 0.0
    %1164 = vmatpush1.msra.mxu0 0.0
    %1165 = vmatprep.subr.mxu0 0.0
    %1166 = vmatpush1.msra.mxu0 0.0
    %1167 = vmatprep.subr.mxu0 0.0
    %1168 = vmatpush1.msra.mxu0 0.0
    %1169 = vmatprep.subr.mxu0 0.0
    %1170 = vmatpush1.msra.mxu0 0.0
    %1171 = vmatprep.subr.mxu0 0.0
    %1172 = vmatpush1.msra.mxu0 0.0
    %1173 = vmatprep.subr.mxu0 0.0
    %1174 = vmatpush1.msra.mxu0 0.0
    %1175 = vmatprep.subr.mxu0 0.0
    %1176 = vmatpush1.msra.mxu0 0.0
    %1177 = vmatprep.subr.mxu0 0.0
    %1178 = vmatpush1.msra.mxu0 0.0
    %1179 = vmatprep.subr.mxu0 0.0
    %1180 = vmatpush1.msra.mxu0 0.0
    %1181 = vmatprep.subr.mxu0 0.0
    %1182 = vmatpush1.msra.mxu0 0.0
    %1183 = vmatprep.subr.mxu0 0.0
    %1184 = vmatpush1.msra.mxu0 0.0
    %1185 = vmatprep.subr.mxu0 0.0
    %1186 = vmatpush1.msra.mxu0 0.0
    %1187 = vmatprep.subr.mxu0 0.0
    %1188 = vmatpush1.msra.mxu0 0.0
    %1189 = vmatprep.subr.mxu0 0.0
    %1190 = vmatpush1.msra.mxu0 0.0
    %1191 = vmatprep.subr.mxu0 0.0
    %1192 = vmatpush1.msra.mxu0 0.0
    %1193 = vmatprep.subr.mxu0 0.0
    %1194 = vmatpush1.msra.mxu0 0.0
    %1195 = vmatprep.mubr.f32.mxu0 0.0
    %1196 = vmatmul.mubr.f32.gmra.mrb[0].mxu0 %v1109
    %v1197 = vpop.f32.mrb[0].mxu0
    %v1198 = vadd.f32 %v1130, %v1197
    %v1199 = vpop.f32.mrb[0].mxu0
    %1200 = vdwg.mxu0
    %vm1201 = vcmask 25600
    %1202 = vst.msk [vmem:[#allocation7] sm:$0x3] %vm1201, %v1198
    // Predicated region
    $region18: #{emg_cnn_forward.1} parent=1 // pred_check
      _
    $region19: #{emg_cnn_forward.1} parent=1 // pred_check_branch
      %1204 = sbr.rel (0) target = $region21
    $region20: #{emg_cnn_forward.1} parent=1 // pred_region
      %s1206 = ssub.s32 32, 32
      %1207 = vsyncadd [#allocation6], %s1206
      %s1209 = sshll.u32 [#allocation7], 4
      %s1210 = int_to_ptr.vmem [resolvable:$true] %s1209
      %1212 = dma.vmem_to_hbm [thread:$0]  %s1210, 32, %s3, [#allocation6]
    $region21: #{emg_cnn_forward.1} parent=1 // pred_fallthru
      _
    // Predicated region
    $region22: #{emg_cnn_forward.1} parent=1 // pred_check
      _
    $region23: #{emg_cnn_forward.1} parent=1 // pred_check_branch
      %1214 = sbr.rel (0) target = $region25
    $region24: #{emg_cnn_forward.1} parent=1 // pred_region
      %1215 = dma.done [#allocation6], 32
    $region25: #{emg_cnn_forward.1} parent=1 // pred_fallthru
      _
    %1216 = vsyncpa [#allocation5], 1
    %1217 = vsyncpa [#allocation6], 1

</llo_original>
